<compile_context>
chip_gen: v7x
topology: tpu7x:2x2x1
jax: 0.10.0
libtpu: 0.0.40
codegen_flags: <defaults>
</compile_context>

<pallas_src>
import functools
import math

import jax
import jax.numpy as jnp
from jax.experimental import pallas as pl
from jax.experimental.pallas import tpu as pltpu


_VMEM_LIMIT = 64 * 1024 * 1024  # raised scoped-VMEM limit; demo usage is tiny, tune per chip.


# ----------------------------------------------------------------------------- helpers

def _act_fn(y, act):
    if act == "silu":
        return y * jax.nn.sigmoid(y)
    if act == "relu":
        return jnp.maximum(y, 0.0)
    if act == "gelu":
        return jax.nn.gelu(y, approximate=False)  # exact erf gelu (torch default)
    return y


def _ln(x, g, b, eps=1e-5):
    mu = jnp.mean(x, axis=-1, keepdims=True)
    xc = x - mu
    var = jnp.mean(xc * xc, axis=-1, keepdims=True)
    return xc * jax.lax.rsqrt(var + eps) * g + b


def _row_tile(M, cap=512):
    """Largest row tile that divides M, is a multiple of 8, <= cap and gives >= 2 grid
    steps (so both v7x TensorCores get work).  Falls back to full M for tiny inputs."""
    if M >= 16:
        for t in (1024, 512, 256, 128, 64, 32, 16, 8):
            if t <= cap and t <= M // 2 and M % t == 0:
                return t
    return M


def _q_tile(Lq, cap=512):
    """Query row tile for the GAU kernel (VMEM bound for large Lq); batch axis already
    provides parallel grid steps, so a single tile is fine when Lq is small."""
    if Lq <= cap:
        return Lq
    for t in (512, 256, 128, 64, 32, 16, 8):
        if Lq % t == 0:
            return t
    return Lq


# ----------------------------------------------------------------------------- embedding kernel

def _embed_kernel(x_ref, xm_ref, wm1_ref, w0_ref, wp1_ref, wt_ref, o_ref):
    """DataEmbedding_wo_pos: circular Conv1d(k=3, no bias) + TimeFeatureEmbedding Linear,
    fused.  Circular time shifts done in VMEM with pltpu.roll; no HBM concat."""
    x = x_ref[0]        # [L, C] f32
    xm = xm_ref[0]      # [L, Cm] f32
    L = x.shape[0]
    # x[t-1] / x[t+1] with circular wrap (roll along the sublane/time axis).
    # NOTE: assumes jnp.roll-style direction; only matters for real-checkpoint weight mapping.
    x_m1 = pltpu.roll(x, shift=1, axis=0)
    x_p1 = pltpu.roll(x, shift=L - 1, axis=0)
    y = (jnp.dot(x_m1.astype(jnp.bfloat16), wm1_ref[...], preferred_element_type=jnp.float32)
         + jnp.dot(x.astype(jnp.bfloat16), w0_ref[...], preferred_element_type=jnp.float32)
         + jnp.dot(x_p1.astype(jnp.bfloat16), wp1_ref[...], preferred_element_type=jnp.float32)
         + jnp.dot(xm.astype(jnp.bfloat16), wt_ref[...], preferred_element_type=jnp.float32))
    o_ref[0] = y.astype(o_ref.dtype)


def data_embedding_wo_pos(p, x, x_mark):
    """Dropout is identity at inference."""
    B, L, C = x.shape
    Cm = x_mark.shape[-1]
    D = p["W_tok0"].shape[1]
    return pl.pallas_call(
        _embed_kernel,
        out_shape=jax.ShapeDtypeStruct((B, L, D), jnp.float32),
        grid=(B,),
        in_specs=[pl.BlockSpec((1, L, C), lambda b: (b, 0, 0)),
                  pl.BlockSpec((1, L, Cm), lambda b: (b, 0, 0)),
                  pl.BlockSpec((C, D), lambda b: (0, 0)),
                  pl.BlockSpec((C, D), lambda b: (0, 0)),
                  pl.BlockSpec((C, D), lambda b: (0, 0)),
                  pl.BlockSpec((Cm, D), lambda b: (0, 0))],
        out_specs=pl.BlockSpec((1, L, D), lambda b: (b, 0, 0)),
        compiler_params=pltpu.CompilerParams(
            dimension_semantics=("parallel",), vmem_limit_bytes=_VMEM_LIMIT),
    )(x, x_mark, p["W_tokm1"], p["W_tok0"], p["W_tokp1"], p["W_time"])


# ----------------------------------------------------------------------------- GAU sub-layer kernel

def _gau_layer_kernel(*refs, H, uv, qk, scale, causal, act, has_bias, norm_kv):
    """Fused gate-attention sub-layer for one (batch, q-tile) grid point:
       LayerNorm(x_q + W_o @ (u * softmax(q k^T / sqrt(qk)) v)),
       optionally normalizing x_kv first (fused encoder-final LayerNorm)."""
    it = iter(refs)
    xq_ref, xkv_ref, wuq_ref, wvk_ref, wo_ref = (next(it) for _ in range(5))
    buq_ref = bvk_ref = bo_ref = None
    if has_bias:
        buq_ref, bvk_ref, bo_ref = (next(it) for _ in range(3))
    kvg_ref = kvb_ref = None
    if norm_kv:
        kvg_ref, kvb_ref = (next(it) for _ in range(2))
    g_ref, beta_ref, o_ref = (next(it) for _ in range(3))

    xq = xq_ref[0]                       # [TQ, D] f32
    xkv = xkv_ref[0]                     # [Lk, D] f32
    TQ, Lk = xq.shape[0], xkv.shape[0]
    guv = H * uv

    if norm_kv:                          # fused encoder-final LayerNorm (cross-attn only)
        xkv = _ln(xkv, kvg_ref[...], kvb_ref[...])

    # fused u/q and v/k projections (bf16 MXU operands, f32 accumulation)
    uq = jnp.dot(xq.astype(jnp.bfloat16), wuq_ref[...],
                 preferred_element_type=jnp.float32)
    vk = jnp.dot(xkv.astype(jnp.bfloat16), wvk_ref[...],
                 preferred_element_type=jnp.float32)
    if has_bias:
        uq = uq + buq_ref[...]
        vk = vk + bvk_ref[...]

    u = _act_fn(uq[:, :guv], act)                 # [TQ, H*uv]  gate (stays f32)
    v = _act_fn(vk[:, :guv], act)                 # [Lk, H*uv]
    qb = uq[:, guv:].astype(jnp.bfloat16)         # [TQ, H*qk]  (128-aligned slice)
    kb = vk[:, guv:].astype(jnp.bfloat16)         # [Lk, H*qk]
    vb = v.astype(jnp.bfloat16)

    if causal:  # boolean mask, built once per kernel invocation, global row offsets
        row0 = pl.program_id(1) * TQ
        rows = row0 + jax.lax.broadcasted_iota(jnp.int32, (TQ, Lk), 0)
        cols = jax.lax.broadcasted_iota(jnp.int32, (TQ, Lk), 1)
        mask = cols <= rows

    wo = wo_ref[...]                              # [H*uv, D] bf16
    acc = None
    for h in range(H):   # static unroll; head slices are 128-lane aligned -> no relayouts
        s = jax.lax.dot_general(
            qb[:, h * qk:(h + 1) * qk], kb[:, h * qk:(h + 1) * qk],
            (((1,), (1,)), ((), ())), preferred_element_type=jnp.float32) * scale
        if causal:
            s = jnp.where(mask, s, -1e30)
        m = jnp.max(s, axis=-1, keepdims=True)
        p = jnp.exp(s - m)                        # f32 softmax math
        denom = jnp.sum(p, axis=-1, keepdims=True)
        ctx = jnp.dot(p.astype(jnp.bfloat16), vb[:, h * uv:(h + 1) * uv],
                      preferred_element_type=jnp.float32)
        # normalize after the PV matmul; reciprocal -> EUP slot
        gated = u[:, h * uv:(h + 1) * uv] * ctx * pl.reciprocal(denom, approx=True)
        # accumulate the per-head output projection instead of concatenating heads
        o_h = jnp.dot(gated.astype(jnp.bfloat16), wo[h * uv:(h + 1) * uv, :],
                      preferred_element_type=jnp.float32)
        acc = o_h if acc is None else acc + o_h
    if has_bias:
        acc = acc + bo_ref[...]

    # residual + post-LayerNorm (f32), one unmasked 128-wide store per row
    y = acc + xq
    o_ref[0] = _ln(y, g_ref[...], beta_ref[...]).astype(o_ref.dtype)


def gau_layer(p, ln_g, ln_b, x_q, x_kv, *, causal, act, kv_ln=None):
    """One fused pallas_call per gate-attention sub-layer. Grid = (batch, q-tiles)."""
    B, Lq, D = x_q.shape
    Lk = x_kv.shape[1]
    H, uv, qk = p["n_heads"], p["uv_size"], p["qk_size"]
    n_uvqk = H * (uv + qk)
    guv = H * uv
    has_bias = p["b_uq"] is not None
    norm_kv = kv_ln is not None
    TQ = _q_tile(Lq)
    nqt = Lq // TQ
    # TODO(synk): for very long Lk add a kv grid axis with online-softmax accumulators.

    args = [x_q, x_kv, p["W_uq"], p["W_vk"], p["W_o"]]
    in_specs = [pl.BlockSpec((1, TQ, D), lambda b, qi: (b, qi, 0)),
                pl.BlockSpec((1, Lk, D), lambda b, qi: (b, 0, 0)),
                pl.BlockSpec((D, n_uvqk), lambda b, qi: (0, 0)),
                pl.BlockSpec((D, n_uvqk), lambda b, qi: (0, 0)),
                pl.BlockSpec((guv, D), lambda b, qi: (0, 0))]
    if has_bias:
        args += [p["b_uq"], p["b_vk"], p["b_o"]]
        in_specs += [pl.BlockSpec((1, n_uvqk), lambda b, qi: (0, 0)),
                     pl.BlockSpec((1, n_uvqk), lambda b, qi: (0, 0)),
                     pl.BlockSpec((1, D), lambda b, qi: (0, 0))]
    if norm_kv:
        args += [kv_ln[0], kv_ln[1]]
        in_specs += [pl.BlockSpec((1, D), lambda b, qi: (0, 0)),
                     pl.BlockSpec((1, D), lambda b, qi: (0, 0))]
    args += [ln_g, ln_b]
    in_specs += [pl.BlockSpec((1, D), lambda b, qi: (0, 0)),
                 pl.BlockSpec((1, D), lambda b, qi: (0, 0))]

    return pl.pallas_call(
        functools.partial(_gau_layer_kernel, H=H, uv=uv, qk=qk,
                          scale=1.0 / math.sqrt(qk), causal=causal, act=act,
                          has_bias=has_bias, norm_kv=norm_kv),
        out_shape=jax.ShapeDtypeStruct((B, Lq, D), jnp.float32),
        grid=(B, nqt),
        in_specs=in_specs,
        out_specs=pl.BlockSpec((1, TQ, D), lambda b, qi: (b, qi, 0)),
        compiler_params=pltpu.CompilerParams(
            dimension_semantics=("parallel", "parallel"),
            vmem_limit_bytes=_VMEM_LIMIT),
    )(*args)


# ----------------------------------------------------------------------------- final norm + projection

def _norm_linear_kernel(x_ref, g_ref, b_ref, w_ref, wb_ref, o_ref):
    """y = LayerNorm(x) @ W + b  (fused decoder final norm + projection, lane-padded output)."""
    xn = _ln(x_ref[...], g_ref[...], b_ref[...])
    y = jnp.dot(xn.astype(jnp.bfloat16), w_ref[...],
                preferred_element_type=jnp.float32) + wb_ref[...]
    o_ref[...] = y.astype(o_ref.dtype)


def norm_project(x, gamma, beta, w_pad, b_pad, out_size):
    B, L, D = x.shape
    Np = w_pad.shape[1]            # projection padded to a multiple of 128 lanes
    M = B * L
    tm = _row_tile(M)
    out = pl.pallas_call(
        _norm_linear_kernel,
        out_shape=jax.ShapeDtypeStruct((M, Np), jnp.float32),
        grid=(M // tm,),
        in_specs=[pl.BlockSpec((tm, D), lambda i: (i, 0)),
                  pl.BlockSpec((1, D), lambda i: (0, 0)),
                  pl.BlockSpec((1, D), lambda i: (0, 0)),
                  pl.BlockSpec((D, Np), lambda i: (0, 0)),
                  pl.BlockSpec((1, Np), lambda i: (0, 0))],
        out_specs=pl.BlockSpec((tm, Np), lambda i: (i, 0)),
        compiler_params=pltpu.CompilerParams(
            dimension_semantics=("parallel",), vmem_limit_bytes=_VMEM_LIMIT),
    )(x.reshape(M, D), gamma, beta, w_pad, b_pad)
    return out.reshape(B, L, Np)[..., :out_size]   # slice lane padding on the wrapper side


# ----------------------------------------------------------------------------- model forward

def multihead_gaformer_forward(params, x_enc, x_mark_enc, x_dec, x_mark_dec):
    act = params["activation"]
    pred_len = params["pred_len"]
    # encoder
    enc = data_embedding_wo_pos(params["enc_emb"], x_enc, x_mark_enc)
    for lp in params["enc_layers"]:
        enc = gau_layer(lp["attn"], lp["ln_g"], lp["ln_b"], enc, enc,
                        causal=False, act=act)
    # encoder-final LayerNorm is folded into the cross-attention kernel below (kv_ln).
    # decoder (dec_selfattn='gate' -> DataEmbedding_wo_pos for the decoder too)
    dec = data_embedding_wo_pos(params["dec_emb"], x_dec, x_mark_dec)
    for lp in params["dec_layers"]:
        dec = gau_layer(lp["self_attn"], lp["ln1_g"], lp["ln1_b"], dec, dec,
                        causal=True, act=act)
        dec = gau_layer(lp["cross_attn"], lp["ln2_g"], lp["ln2_b"], dec, enc,
                        causal=False, act=act,
                        kv_ln=(params["enc_norm_g"], params["enc_norm_b"]))
    # per-row final norm + projection commute with the pred_len slice -> slice first
    dec_tail = dec[:, -pred_len:, :]
    return norm_project(dec_tail, params["dec_norm_g"], params["dec_norm_b"],
                        params["W_proj"], params["b_proj"], params["out_size"])


# ----------------------------------------------------------------------------- deterministic params

def _dense(key, shape, scale=0.02):
    return scale * jax.random.normal(key, shape, dtype=jnp.float32)


def init_gate_attn_params(key, d_model, n_heads, uv_size, qk_size, use_bias=True):
    # uv_size / qk_size should be multiples of 128 so in-kernel head slices stay lane-aligned.
    ks = jax.random.split(key, 5)
    W_u = _dense(ks[0], (d_model, n_heads * uv_size))
    W_v = _dense(ks[1], (d_model, n_heads * uv_size))
    W_q = _dense(ks[2], (d_model, n_heads * qk_size))
    W_k = _dense(ks[3], (d_model, n_heads * qk_size))
    W_o = _dense(ks[4], (n_heads * uv_size, d_model))
    p = {"n_heads": n_heads, "uv_size": uv_size, "qk_size": qk_size,
         # fused projection weights, stored bf16 for the MXU fast path
         "W_uq": jnp.concatenate([W_u, W_q], axis=1).astype(jnp.bfloat16),
         "W_vk": jnp.concatenate([W_v, W_k], axis=1).astype(jnp.bfloat16),
         "W_o": W_o.astype(jnp.bfloat16)}
    if use_bias:
        n_uvqk = n_heads * (uv_size + qk_size)
        p["b_uq"] = jnp.zeros((1, n_uvqk), jnp.float32)
        p["b_vk"] = jnp.zeros((1, n_uvqk), jnp.float32)
        p["b_o"] = jnp.zeros((1, d_model), jnp.float32)
    else:
        p["b_uq"] = p["b_vk"] = p["b_o"] = None
    return p


def _emb_params(keys, c_in, mark_in, D):
    # PyTorch Conv1d weight (D, c_in, 3) with circular padding, no bias:
    #   y[t] = W[..,0] x[t-1] + W[..,1] x[t] + W[..,2] x[t+1];  TimeFeatureEmbedding has no bias.
    return {"W_tokm1": _dense(next(keys), (c_in, D)).astype(jnp.bfloat16),
            "W_tok0": _dense(next(keys), (c_in, D)).astype(jnp.bfloat16),
            "W_tokp1": _dense(next(keys), (c_in, D)).astype(jnp.bfloat16),
            "W_time": _dense(next(keys), (mark_in, D)).astype(jnp.bfloat16)}


def init_params(key, a):
    keys = iter(jax.random.split(key, 128))
    D = a["d_model"]
    Np = ((a["out_size"] + 127) // 128) * 128          # lane-pad the projection output
    W_proj = _dense(next(keys), (D, a["out_size"]))
    W_proj_pad = jnp.zeros((D, Np), jnp.float32).at[:, :a["out_size"]].set(W_proj)

    params = {
        "pred_len": a["pred_len"], "activation": a["activation"], "out_size": a["out_size"],
        "enc_emb": _emb_params(keys, a["enc_in"], a["mark_in"], D),
        "dec_emb": _emb_params(keys, a["dec_in"], a["mark_in"], D),
        "enc_layers": [], "dec_layers": [],
        "enc_norm_g": jnp.ones((1, D), jnp.float32),
        "enc_norm_b": jnp.zeros((1, D), jnp.float32),
        "dec_norm_g": jnp.ones((1, D), jnp.float32),
        "dec_norm_b": jnp.zeros((1, D), jnp.float32),
        "W_proj": W_proj_pad.astype(jnp.bfloat16),
        "b_proj": jnp.zeros((1, Np), jnp.float32),
    }
    for _ in range(a["e_layers"]):
        params["enc_layers"].append({
            "attn": init_gate_attn_params(next(keys), D, a["n_heads"],
                                          a["uv_size"], a["qk_size"], a["use_bias"]),
            "ln_g": jnp.ones((1, D), jnp.float32),
            "ln_b": jnp.zeros((1, D), jnp.float32)})
    for _ in range(a["d_layers"]):
        params["dec_layers"].append({
            "self_attn": init_gate_attn_params(next(keys), D, a["n_heads"],
                                               a["uv_size"], a["qk_size"], a["use_bias"]),
            "cross_attn": init_gate_attn_params(next(keys), D, a["n_heads"],
                                                a["uv_size"], a["qk_size"], a["use_bias"]),
            "ln1_g": jnp.ones((1, D), jnp.float32),
            "ln1_b": jnp.zeros((1, D), jnp.float32),
            "ln2_g": jnp.ones((1, D), jnp.float32),
            "ln2_b": jnp.zeros((1, D), jnp.float32)})
    return params


# ----------------------------------------------------------------------------- main

if __name__ == "__main__":
    args = dict(
        enc_in=4, dec_in=4, mark_in=4, out_size=4,
        # lane-dense config: d_model, H*uv, H*qk, n_uvqk are all multiples of 128
        d_model=128, n_heads=2, uv_size=128, qk_size=128,
        e_layers=2, d_layers=1,
        seq_len=16, label_len=8, pred_len=8,
        activation="silu", use_bias=True,
        # dec_selfattn='gate', dec_crossattn='gate', distil=False, output_attention=False
    )

    root = jax.random.PRNGKey(0)
    kp, k1, k2, k3, k4 = jax.random.split(root, 5)
    params = init_params(kp, args)

    B = 2
    L_enc = args["seq_len"]
    L_dec = args["label_len"] + args["pred_len"]
    x_enc = jax.random.normal(k1, (B, L_enc, args["enc_in"]), dtype=jnp.float32)
    x_mark_enc = jax.random.normal(k2, (B, L_enc, args["mark_in"]), dtype=jnp.float32)
    x_dec = jax.random.normal(k3, (B, L_dec, args["dec_in"]), dtype=jnp.float32)
    x_mark_dec = jax.random.normal(k4, (B, L_dec, args["mark_in"]), dtype=jnp.float32)

    out = multihead_gaformer_forward(params, x_enc, x_mark_enc, x_dec, x_mark_dec)
    out = jax.block_until_ready(out)
    assert out.shape == (B, args["pred_len"], args["out_size"]), out.shape
    assert bool(jnp.all(jnp.isfinite(out)))
    print("KERNEL_OK")
</pallas_src>

<mosaic_0001>
module attributes {stable_mosaic.version = 11 : i64} {
  func.func @_embed_kernel(%arg0: i32, %arg1: memref<1x16x4xf32, #tpu.memory_space<vmem>>, %arg2: memref<1x16x4xf32, #tpu.memory_space<vmem>>, %arg3: memref<4x128xbf16, #tpu.memory_space<vmem>>, %arg4: memref<4x128xbf16, #tpu.memory_space<vmem>>, %arg5: memref<4x128xbf16, #tpu.memory_space<vmem>>, %arg6: memref<4x128xbf16, #tpu.memory_space<vmem>>, %arg7: memref<1x16x128xf32, #tpu.memory_space<vmem>>) attributes {dimension_semantics = [#tpu.dimension_semantics<parallel>], iteration_bounds = array<i64: 2>, scalar_prefetch = 0 : i64, scratch_operands = 0 : i64, tpu.core_type = #tpu.core_type<tc>, window_params = [{transform_indices = @transform_0, window_bounds = array<i64: 1, 16, 4>}, {transform_indices = @transform_1, window_bounds = array<i64: 1, 16, 4>}, {pipeline_mode = #tpu.pipeline_mode<synchronous>, transform_indices = @transform_2, window_bounds = array<i64: 4, 128>}, {pipeline_mode = #tpu.pipeline_mode<synchronous>, transform_indices = @transform_3, window_bounds = array<i64: 4, 128>}, {pipeline_mode = #tpu.pipeline_mode<synchronous>, transform_indices = @transform_4, window_bounds = array<i64: 4, 128>}, {pipeline_mode = #tpu.pipeline_mode<synchronous>, transform_indices = @transform_5, window_bounds = array<i64: 4, 128>}, {transform_indices = @transform_6, window_bounds = array<i64: 1, 16, 128>}]} {
    %c0 = arith.constant 0 : index
    %c0_0 = arith.constant 0 : index
    %c0_1 = arith.constant 0 : index
    %0 = vector.load %arg1[%c0, %c0_0, %c0_1] : memref<1x16x4xf32, #tpu.memory_space<vmem>>, vector<1x16x4xf32>
    %1 = vector.shape_cast %0 : vector<1x16x4xf32> to vector<16x4xf32>
    %c0_2 = arith.constant 0 : index
    %c0_3 = arith.constant 0 : index
    %c0_4 = arith.constant 0 : index
    %2 = vector.load %arg2[%c0_2, %c0_3, %c0_4] : memref<1x16x4xf32, #tpu.memory_space<vmem>>, vector<1x16x4xf32>
    %3 = vector.shape_cast %2 : vector<1x16x4xf32> to vector<16x4xf32>
    %c1_i32 = arith.constant 1 : i32
    %4 = tpu.dynamic_rotate %1 by %c1_i32 dim 0 : vector<16x4xf32>, i32 -> vector<16x4xf32>
    %c15_i32 = arith.constant 15 : i32
    %5 = tpu.dynamic_rotate %1 by %c15_i32 dim 0 : vector<16x4xf32>, i32 -> vector<16x4xf32>
    %6 = arith.truncf %4 : vector<16x4xf32> to vector<16x4xbf16>
    %c0_5 = arith.constant 0 : index
    %c0_6 = arith.constant 0 : index
    %7 = vector.load %arg3[%c0_5, %c0_6] : memref<4x128xbf16, #tpu.memory_space<vmem>>, vector<4x128xbf16>
    %cst = arith.constant dense<0.000000e+00> : vector<16x128xf32>
    %8 = tpu.matmul %6, %7, %cst {dimension_numbers = #tpu.dot_dimension_numbers<[1], [0], [0], [1], [0, 0, 1, 1], [], []>} : vector<16x4xbf16>, vector<4x128xbf16>, vector<16x128xf32> -> vector<16x128xf32>
    %9 = arith.truncf %1 : vector<16x4xf32> to vector<16x4xbf16>
    %c0_7 = arith.constant 0 : index
    %c0_8 = arith.constant 0 : index
    %10 = vector.load %arg4[%c0_7, %c0_8] : memref<4x128xbf16, #tpu.memory_space<vmem>>, vector<4x128xbf16>
    %cst_9 = arith.constant dense<0.000000e+00> : vector<16x128xf32>
    %11 = tpu.matmul %9, %10, %cst_9 {dimension_numbers = #tpu.dot_dimension_numbers<[1], [0], [0], [1], [0, 0, 1, 1], [], []>} : vector<16x4xbf16>, vector<4x128xbf16>, vector<16x128xf32> -> vector<16x128xf32>
    %12 = arith.addf %8, %11 : vector<16x128xf32>
    %13 = arith.truncf %5 : vector<16x4xf32> to vector<16x4xbf16>
    %c0_10 = arith.constant 0 : index
    %c0_11 = arith.constant 0 : index
    %14 = vector.load %arg5[%c0_10, %c0_11] : memref<4x128xbf16, #tpu.memory_space<vmem>>, vector<4x128xbf16>
    %cst_12 = arith.constant dense<0.000000e+00> : vector<16x128xf32>
    %15 = tpu.matmul %13, %14, %cst_12 {dimension_numbers = #tpu.dot_dimension_numbers<[1], [0], [0], [1], [0, 0, 1, 1], [], []>} : vector<16x4xbf16>, vector<4x128xbf16>, vector<16x128xf32> -> vector<16x128xf32>
    %16 = arith.addf %12, %15 : vector<16x128xf32>
    %17 = arith.truncf %3 : vector<16x4xf32> to vector<16x4xbf16>
    %c0_13 = arith.constant 0 : index
    %c0_14 = arith.constant 0 : index
    %18 = vector.load %arg6[%c0_13, %c0_14] : memref<4x128xbf16, #tpu.memory_space<vmem>>, vector<4x128xbf16>
    %cst_15 = arith.constant dense<0.000000e+00> : vector<16x128xf32>
    %19 = tpu.matmul %17, %18, %cst_15 {dimension_numbers = #tpu.dot_dimension_numbers<[1], [0], [0], [1], [0, 0, 1, 1], [], []>} : vector<16x4xbf16>, vector<4x128xbf16>, vector<16x128xf32> -> vector<16x128xf32>
    %20 = arith.addf %16, %19 : vector<16x128xf32>
    %c0_16 = arith.constant 0 : index
    %c0_17 = arith.constant 0 : index
    %c0_18 = arith.constant 0 : index
    %21 = vector.load %arg7[%c0_16, %c0_17, %c0_18] : memref<1x16x128xf32, #tpu.memory_space<vmem>>, vector<1x16x128xf32>
    %22 = vector.shape_cast %21 : vector<1x16x128xf32> to vector<16x128xf32>
    %23 = vector.shape_cast %20 : vector<16x128xf32> to vector<1x16x128xf32>
    tpu.vector_store %arg7[%c0_16, %c0_17, %c0_18], %23 {strides = array<i32>} : memref<1x16x128xf32, #tpu.memory_space<vmem>>, vector<1x16x128xf32>,
    return
  }
  func.func @transform_0(%arg0: i32) -> (i32, i32, i32) {
    %c0_i32 = arith.constant 0 : i32
    %c0_i32_0 = arith.constant 0 : i32
    %c0_i32_1 = arith.constant 0 : i32
    return %arg0, %c0_i32, %c0_i32_0 : i32, i32, i32
  }
  func.func @transform_1(%arg0: i32) -> (i32, i32, i32) {
    %c0_i32 = arith.constant 0 : i32
    %c0_i32_0 = arith.constant 0 : i32
    %c0_i32_1 = arith.constant 0 : i32
    return %arg0, %c0_i32, %c0_i32_0 : i32, i32, i32
  }
  func.func @transform_2(%arg0: i32) -> (i32, i32) {
    %c0_i32 = arith.constant 0 : i32
    %c0_i32_0 = arith.constant 0 : i32
    %c0_i32_1 = arith.constant 0 : i32
    return %c0_i32, %c0_i32_0 : i32, i32
  }
  func.func @transform_3(%arg0: i32) -> (i32, i32) {
    %c0_i32 = arith.constant 0 : i32
    %c0_i32_0 = arith.constant 0 : i32
    %c0_i32_1 = arith.constant 0 : i32
    return %c0_i32, %c0_i32_0 : i32, i32
  }
  func.func @transform_4(%arg0: i32) -> (i32, i32) {
    %c0_i32 = arith.constant 0 : i32
    %c0_i32_0 = arith.constant 0 : i32
    %c0_i32_1 = arith.constant 0 : i32
    return %c0_i32, %c0_i32_0 : i32, i32
  }
  func.func @transform_5(%arg0: i32) -> (i32, i32) {
    %c0_i32 = arith.constant 0 : i32
    %c0_i32_0 = arith.constant 0 : i32
    %c0_i32_1 = arith.constant 0 : i32
    return %c0_i32, %c0_i32_0 : i32, i32
  }
  func.func @transform_6(%arg0: i32) -> (i32, i32, i32) {
    %c0_i32 = arith.constant 0 : i32
    %c0_i32_0 = arith.constant 0 : i32
    %c0_i32_1 = arith.constant 0 : i32
    return %arg0, %c0_i32, %c0_i32_0 : i32, i32, i32
  }
}

</mosaic_0001>

<llo_original>
// kernel: tpu_custom_call.1
$region0: #{tpu_custom_call.1}
  #allocation0 [shape = 'u32[]', space=smem, size = 0x4, offset = 0x4, fixed_abs, tag = 'smem constant byte address 0x4 - core index']
  #allocation1 [shape = 'u32[144,128]{1,0:T(1,128)}', space=vmem, size = 0x12000, scoped, tag = 'internal scratch']
  %s0 = inlined_call_operand.hbm [shape: f32[2,16,4], index: 0, kind: input, shape index: {}]
  %s1 = inlined_call_operand.hbm [shape: f32[2,16,4], index: 1, kind: input, shape index: {}]
  %s2 = inlined_call_operand.hbm [shape: bf16[4,128], index: 2, kind: input, shape index: {}]
  %s3 = inlined_call_operand.hbm [shape: bf16[4,128], index: 3, kind: input, shape index: {}]
  %s4 = inlined_call_operand.hbm [shape: bf16[4,128], index: 4, kind: input, shape index: {}]
  %s5 = inlined_call_operand.hbm [shape: bf16[4,128], index: 5, kind: input, shape index: {}]
  %s6 = inlined_call_operand.hbm [shape: f32[2,16,128], index: 6, kind: output, shape index: {}]
  %s7 = sld [smem:[#allocation0]]
  $region81: #{tpu_custom_call.1} parent=0
    _
  %s9 = ssub.s32 1, %s7
  %s10 = scalar_select 0, %s9, %s7
  $region1: #{tpu_custom_call.1} parent=0
    #allocation2 [shape = 'u8[16384]{0}', space=vmem, size = 0x4000, scoped, tag = 'input window, operand 0']
    #allocation3 [shape = 's32[2]{0}', space=sflag, size = 0x8, scoped, tag = 'scoped memory for tpu_custom_call.1']
    #allocation4 [shape = 's32[2]{0}', space=sflag, size = 0x8, scoped, tag = 'scoped memory for tpu_custom_call.1']
    #allocation5 [shape = 'u8[16384]{0}', space=vmem, size = 0x4000, scoped, tag = 'input window, operand 1']
    #allocation6 [shape = 's32[2]{0}', space=sflag, size = 0x8, scoped, tag = 'scoped memory for tpu_custom_call.1']
    #allocation7 [shape = 'u8[1024]{0}', space=vmem, size = 0x400, scoped, tag = 'input window, operand 2, single buffered']
    #allocation8 [shape = 'u8[1024]{0}', space=vmem, size = 0x400, scoped, tag = 'input window, operand 3, single buffered']
    #allocation9 [shape = 's32[1]{0}', space=sflag, size = 0x4, scoped, tag = 'scoped memory for tpu_custom_call.1']
    #allocation10 [shape = 'u8[1024]{0}', space=vmem, size = 0x400, scoped, tag = 'input window, operand 4, single buffered']
    #allocation11 [shape = 'u8[1024]{0}', space=vmem, size = 0x400, scoped, tag = 'input window, operand 5, single buffered']
    #allocation12 [shape = 's32[1]{0}', space=sflag, size = 0x4, scoped, tag = 'scoped memory for tpu_custom_call.1']
    #allocation13 [shape = 'u8[16384]{0}', space=vmem, size = 0x4000, scoped, tag = 'output window, operand 0']
    %11 = vsyncpa [#allocation3], 0
    %s12 = scalar_lea.sflag [#allocation3], 1
    %13 = vsyncpa %s12, 0
    %14 = vsyncpa [#allocation6], 0
    %s15 = scalar_lea.sflag [#allocation6], 1
    %16 = vsyncpa %s15, 0
    %17 = vsyncpa [#allocation9], 0
    %18 = vsyncpa [#allocation12], 0
    %19 = vsyncpa [#allocation4], 0
    %s20 = scalar_lea.sflag [#allocation4], 1
    %21 = vsyncpa %s20, 0
    loop: start=0, step=1, limit=4
    $region2: #{tpu_custom_call.1} parent=1 // loop_pre_header
      _
    $region3: #{tpu_custom_call.1} parent=1 // loop_header
      %s23 = sphi 0, %s27
      %p24 = scmp.ge.s32.totalorder %s23, 4
      %s33 = sphi 0, %s35
      %s36 = sphi 0, %s33
      %s37 = sphi 0, %s36
      %s53 = sphi 0, %s37
      %s59 = sphi 0, %s61
      %s62 = sphi 0, %s59
      %s63 = sphi 0, %s62
      %s79 = sphi 0, %s63
      %s83 = sphi 0, %s83
      %s85 = sphi 0, %s83
      %s86 = sphi 0, %s85
      %s100 = sphi 0, %s86
      %s104 = sphi 0, %s104
      %s106 = sphi 0, %s104
      %s107 = sphi 0, %s106
      %s121 = sphi 0, %s107
      %s125 = sphi 0, %s125
      %s127 = sphi 0, %s125
      %s128 = sphi 0, %s127
      %s142 = sphi 0, %s128
      %s146 = sphi 0, %s146
      %s148 = sphi 0, %s146
      %s149 = sphi 0, %s148
      %s163 = sphi 0, %s149
      %s169 = sphi 0, %s171
      %s172 = sphi 0, %s169
      %s173 = sphi 0, %s172
      %s189 = sphi 0, %s173
    $region4: #{tpu_custom_call.1} parent=1 // loop_header_branch
      %26 = sbr.rel (%p24) target = $region8
    $region5: #{tpu_custom_call.1} parent=1 // loop_body
      %s28 = ssub.s32 %s23, 1
      %s29 = ssub.s32 %s23, 2
      %s30 = sadd.s32 %s23, 1
      %s31 = ssub.s32 %s23, %s30
      %p32 = scmp.eq.s32.totalorder %s31, 0
      %s34 = sadd.s32 %s33, 1
      %s35 = scalar_select %p32, %s33, %s34
      %p38 = pneg %p32
      %p39 = scmp.eq.s32.totalorder %s23, 1
      %p40 = por %p38, %p39
      %p41 = scmp.ne.s32.totalorder %s33, %s36
      %p42 = scmp.eq.s32.totalorder %s23, 0
      %p43 = por %p41, %p42
      %p44 = scmp.ne.s32.totalorder %s33, %s36
      %p45 = scmp.eq.s32.totalorder %s28, 1
      %p46 = por %p44, %p45
      %p47 = scmp.ne.s32.totalorder %s36, %s37
      %p48 = scmp.eq.s32.totalorder %s28, 0
      %p49 = por %p47, %p48
      %p50 = scmp.ne.s32.totalorder %s36, %s37
      %p51 = scmp.eq.s32.totalorder %s29, 1
      %p52 = por %p50, %p51
      %p54 = scmp.ne.s32.totalorder %s37, %s53
      %p55 = scmp.eq.s32.totalorder %s29, 0
      %p56 = por %p54, %p55
      %s57 = ssub.s32 %s23, %s30
      %p58 = scmp.eq.s32.totalorder %s57, 0
      %s60 = sadd.s32 %s59, 1
      %s61 = scalar_select %p58, %s59, %s60
      %p64 = pneg %p58
      %p65 = scmp.eq.s32.totalorder %s23, 1
      %p66 = por %p64, %p65
      %p67 = scmp.ne.s32.totalorder %s59, %s62
      %p68 = scmp.eq.s32.totalorder %s23, 0
      %p69 = por %p67, %p68
      %p70 = scmp.ne.s32.totalorder %s59, %s62
      %p71 = scmp.eq.s32.totalorder %s28, 1
      %p72 = por %p70, %p71
      %p73 = scmp.ne.s32.totalorder %s62, %s63
      %p74 = scmp.eq.s32.totalorder %s28, 0
      %p75 = por %p73, %p74
      %p76 = scmp.ne.s32.totalorder %s62, %s63
      %p77 = scmp.eq.s32.totalorder %s29, 1
      %p78 = por %p76, %p77
      %p80 = scmp.ne.s32.totalorder %s63, %s79
      %p81 = scmp.eq.s32.totalorder %s29, 0
      %p82 = por %p80, %p81
      %s84 = sadd.s32 %s83, 1
      %p87 = scmp.eq.s32.totalorder %s23, 1
      %p88 = scmp.ne.s32.totalorder %s83, %s85
      %p89 = scmp.eq.s32.totalorder %s23, 0
      %p90 = por %p88, %p89
      %p91 = scmp.ne.s32.totalorder %s83, %s85
      %p92 = scmp.eq.s32.totalorder %s28, 1
      %p93 = por %p91, %p92
      %p94 = scmp.ne.s32.totalorder %s85, %s86
      %p95 = scmp.eq.s32.totalorder %s28, 0
      %p96 = por %p94, %p95
      %p97 = scmp.ne.s32.totalorder %s85, %s86
      %p98 = scmp.eq.s32.totalorder %s29, 1
      %p99 = por %p97, %p98
      %p101 = scmp.ne.s32.totalorder %s86, %s100
      %p102 = scmp.eq.s32.totalorder %s29, 0
      %p103 = por %p101, %p102
      %s105 = sadd.s32 %s104, 1
      %p108 = scmp.eq.s32.totalorder %s23, 1
      %p109 = scmp.ne.s32.totalorder %s104, %s106
      %p110 = scmp.eq.s32.totalorder %s23, 0
      %p111 = por %p109, %p110
      %p112 = scmp.ne.s32.totalorder %s104, %s106
      %p113 = scmp.eq.s32.totalorder %s28, 1
      %p114 = por %p112, %p113
      %p115 = scmp.ne.s32.totalorder %s106, %s107
      %p116 = scmp.eq.s32.totalorder %s28, 0
      %p117 = por %p115, %p116
      %p118 = scmp.ne.s32.totalorder %s106, %s107
      %p119 = scmp.eq.s32.totalorder %s29, 1
      %p120 = por %p118, %p119
      %p122 = scmp.ne.s32.totalorder %s107, %s121
      %p123 = scmp.eq.s32.totalorder %s29, 0
      %p124 = por %p122, %p123
      %s126 = sadd.s32 %s125, 1
      %p129 = scmp.eq.s32.totalorder %s23, 1
      %p130 = scmp.ne.s32.totalorder %s125, %s127
      %p131 = scmp.eq.s32.totalorder %s23, 0
      %p132 = por %p130, %p131
      %p133 = scmp.ne.s32.totalorder %s125, %s127
      %p134 = scmp.eq.s32.totalorder %s28, 1
      %p135 = por %p133, %p134
      %p136 = scmp.ne.s32.totalorder %s127, %s128
      %p137 = scmp.eq.s32.totalorder %s28, 0
      %p138 = por %p136, %p137
      %p139 = scmp.ne.s32.totalorder %s127, %s128
      %p140 = scmp.eq.s32.totalorder %s29, 1
      %p141 = por %p139, %p140
      %p143 = scmp.ne.s32.totalorder %s128, %s142
      %p144 = scmp.eq.s32.totalorder %s29, 0
      %p145 = por %p143, %p144
      %s147 = sadd.s32 %s146, 1
      %p150 = scmp.eq.s32.totalorder %s23, 1
      %p151 = scmp.ne.s32.totalorder %s146, %s148
      %p152 = scmp.eq.s32.totalorder %s23, 0
      %p153 = por %p151, %p152
      %p154 = scmp.ne.s32.totalorder %s146, %s148
      %p155 = scmp.eq.s32.totalorder %s28, 1
      %p156 = por %p154, %p155
      %p157 = scmp.ne.s32.totalorder %s148, %s149
      %p158 = scmp.eq.s32.totalorder %s28, 0
      %p159 = por %p157, %p158
      %p160 = scmp.ne.s32.totalorder %s148, %s149
      %p161 = scmp.eq.s32.totalorder %s29, 1
      %p162 = por %p160, %p161
      %p164 = scmp.ne.s32.totalorder %s149, %s163
      %p165 = scmp.eq.s32.totalorder %s29, 0
      %p166 = por %p164, %p165
      %s167 = ssub.s32 %s23, %s30
      %p168 = scmp.eq.s32.totalorder %s167, 0
      %s170 = sadd.s32 %s169, 1
      %s171 = scalar_select %p168, %s169, %s170
      %p174 = pneg %p168
      %p175 = scmp.eq.s32.totalorder %s23, 1
      %p176 = por %p174, %p175
      %p177 = scmp.ne.s32.totalorder %s169, %s172
      %p178 = scmp.eq.s32.totalorder %s23, 0
      %p179 = por %p177, %p178
      %p180 = scmp.ne.s32.totalorder %s169, %s172
      %p181 = scmp.eq.s32.totalorder %s28, 1
      %p182 = por %p180, %p181
      %p183 = scmp.ne.s32.totalorder %s172, %s173
      %p184 = scmp.eq.s32.totalorder %s28, 0
      %p185 = por %p183, %p184
      %p186 = scmp.ne.s32.totalorder %s172, %s173
      %p187 = scmp.eq.s32.totalorder %s29, 1
      %p188 = por %p186, %p187
      %p190 = scmp.ne.s32.totalorder %s173, %s189
      %p191 = scmp.eq.s32.totalorder %s29, 0
      %p192 = por %p190, %p191
      %p193 = scmp.le.s32.totalorder 1, %s23
      %p194 = scmp.lt.s32.totalorder %s23, 3
      %p195 = pnand %p193, %p194
      %p196 = pneg %p195
      // Predicated region
      $region9: #{tpu_custom_call.1} parent=5 // pred_check
        _
      $region10: #{tpu_custom_call.1} parent=5 // pred_check_branch
        %198 = sbr.rel (%p195) target = $region12
      $region11: #{tpu_custom_call.1} parent=5 // pred_region
        %s199 = ssub.s32 %s23, 1
        // Predicated region
        $region13: #{tpu_custom_call.1} parent=11 // pred_check
          %p200 = pneg %p96
        $region14: #{tpu_custom_call.1} parent=11 // pred_check_branch
          %202 = sbr.rel (%p200) target = $region16
        $region15: #{tpu_custom_call.1} parent=11 // pred_region
          %s204 = ssub.s32 32, 32
          %205 = vsyncadd [#allocation6], %s204
          %s207 = sshll.u32 [#allocation7], 4
          %s208 = int_to_ptr.vmem [resolvable:$true] %s207
          %210 = dma.hbm_to_vmem [thread:$0]  %s2, 32, %s208, [#allocation6]
        $region16: #{tpu_custom_call.1} parent=11 // pred_fallthru
          _
        // Predicated region
        $region17: #{tpu_custom_call.1} parent=11 // pred_check
          %p211 = pneg %p117
        $region18: #{tpu_custom_call.1} parent=11 // pred_check_branch
          %213 = sbr.rel (%p211) target = $region20
        $region19: #{tpu_custom_call.1} parent=11 // pred_region
          %s215 = ssub.s32 32, 32
          %216 = vsyncadd [#allocation9], %s215
          %s218 = sshll.u32 [#allocation8], 4
          %s219 = int_to_ptr.vmem [resolvable:$true] %s218
          %221 = dma.hbm_to_vmem [thread:$0]  %s3, 32, %s219, [#allocation9]
        $region20: #{tpu_custom_call.1} parent=11 // pred_fallthru
          _
        // Predicated region
        $region21: #{tpu_custom_call.1} parent=11 // pred_check
          %p222 = pneg %p138
        $region22: #{tpu_custom_call.1} parent=11 // pred_check_branch
          %224 = sbr.rel (%p222) target = $region24
        $region23: #{tpu_custom_call.1} parent=11 // pred_region
          %s226 = ssub.s32 32, 32
          %227 = vsyncadd [#allocation9], %s226
          %s229 = sshll.u32 [#allocation10], 4
          %s230 = int_to_ptr.vmem [resolvable:$true] %s229
          %232 = dma.hbm_to_vmem [thread:$0]  %s4, 32, %s230, [#allocation9]
        $region24: #{tpu_custom_call.1} parent=11 // pred_fallthru
          _
        // Predicated region
        $region25: #{tpu_custom_call.1} parent=11 // pred_check
          %p233 = pneg %p159
        $region26: #{tpu_custom_call.1} parent=11 // pred_check_branch
          %235 = sbr.rel (%p233) target = $region28
        $region27: #{tpu_custom_call.1} parent=11 // pred_region
          %s237 = ssub.s32 32, 32
          %238 = vsyncadd [#allocation12], %s237
          %s240 = sshll.u32 [#allocation11], 4
          %s241 = int_to_ptr.vmem [resolvable:$true] %s240
          %243 = dma.hbm_to_vmem [thread:$0]  %s5, 32, %s241, [#allocation12]
        $region28: #{tpu_custom_call.1} parent=11 // pred_fallthru
          _
      $region12: #{tpu_custom_call.1} parent=5 // pred_fallthru
        _
      %p244 = scmp.lt.s32.totalorder %s23, 2
      // Predicated region
      $region29: #{tpu_custom_call.1} parent=5 // pred_check
        %p245 = pneg %p244
      $region30: #{tpu_custom_call.1} parent=5 // pred_check_branch
        %247 = sbr.rel (%p245) target = $region32
      $region31: #{tpu_custom_call.1} parent=5 // pred_region
        // Predicated region
        $region33: #{tpu_custom_call.1} parent=31 // pred_check
          %p248 = pneg %p43
        $region34: #{tpu_custom_call.1} parent=31 // pred_check_branch
          %250 = sbr.rel (%p248) target = $region36
        $region35: #{tpu_custom_call.1} parent=31 // pred_region
          %s251 = sand.u32 %s33, 1
          %s252 = scalar_lea.sflag [#allocation3], %s251
          %s253 = sand.u32 %s33, 1
          %s254 = smul.addr %s253, 16
          %s255 = scalar_lea.vmem [#allocation2], %s254
          %s257 = ssub.s32 256, 256
          %258 = vsyncadd %s252, %s257
          %s259 = smul.addr %s23, 2
          %s260 = smul.addr %s259, 128
          %s261 = scalar_lea.hbm %s0, %s260
          %s262 = sshll.u32 %s255, 4
          %s263 = int_to_ptr.vmem [resolvable:$true] %s262
          %268 = dma.hbm_to_vmem [thread:$0]  %s261, 256, %s263, %s252, 128, 128, 8
        $region36: #{tpu_custom_call.1} parent=31 // pred_fallthru
          _
        // Predicated region
        $region37: #{tpu_custom_call.1} parent=31 // pred_check
          %p269 = pneg %p69
        $region38: #{tpu_custom_call.1} parent=31 // pred_check_branch
          %271 = sbr.rel (%p269) target = $region40
        $region39: #{tpu_custom_call.1} parent=31 // pred_region
          %s272 = sand.u32 %s23, 1
          %s273 = scalar_lea.sflag [#allocation6], %s272
          %s274 = sand.u32 %s59, 1
          %s275 = smul.addr %s274, 16
          %s276 = scalar_lea.vmem [#allocation5], %s275
          %s278 = ssub.s32 256, 256
          %279 = vsyncadd %s273, %s278
          %s280 = smul.addr %s23, 2
          %s281 = smul.addr %s280, 128
          %s282 = scalar_lea.hbm %s1, %s281
          %s283 = sshll.u32 %s276, 4
          %s284 = int_to_ptr.vmem [resolvable:$true] %s283
          %289 = dma.hbm_to_vmem [thread:$0]  %s282, 256, %s284, %s273, 128, 128, 8
        $region40: #{tpu_custom_call.1} parent=31 // pred_fallthru
          _
      $region32: #{tpu_custom_call.1} parent=5 // pred_fallthru
        _
      %p290 = scmp.le.s32.totalorder 1, %s23
      %p291 = scmp.lt.s32.totalorder %s23, 3
      %p292 = pnand %p290, %p291
      %p293 = pneg %p292
      // Predicated region
      $region41: #{tpu_custom_call.1} parent=5 // pred_check
        _
      $region42: #{tpu_custom_call.1} parent=5 // pred_check_branch
        %295 = sbr.rel (%p292) target = $region44
      $region43: #{tpu_custom_call.1} parent=5 // pred_region
        %s296 = ssub.s32 %s23, 1
        %s297 = sand.u32 %s36, 1
        %s298 = scalar_lea.sflag [#allocation3], %s297
        %s299 = sand.u32 %s36, 1
        %s300 = smul.addr %s299, 16
        %s301 = scalar_lea.vmem [#allocation2], %s300
        // Predicated region
        $region45: #{tpu_custom_call.1} parent=43 // pred_check
          %p302 = pneg %p49
        $region46: #{tpu_custom_call.1} parent=43 // pred_check_branch
          %304 = sbr.rel (%p302) target = $region48
        $region47: #{tpu_custom_call.1} parent=43 // pred_region
          %305 = dma.done %s298, 256
        $region48: #{tpu_custom_call.1} parent=43 // pred_fallthru
          _
        %s306 = sand.u32 %s28, 1
        %s307 = scalar_lea.sflag [#allocation6], %s306
        %s308 = sand.u32 %s62, 1
        %s309 = smul.addr %s308, 16
        %s310 = scalar_lea.vmem [#allocation5], %s309
        // Predicated region
        $region49: #{tpu_custom_call.1} parent=43 // pred_check
          %p311 = pneg %p75
        $region50: #{tpu_custom_call.1} parent=43 // pred_check_branch
          %313 = sbr.rel (%p311) target = $region52
        $region51: #{tpu_custom_call.1} parent=43 // pred_region
          %314 = dma.done %s307, 256
        $region52: #{tpu_custom_call.1} parent=43 // pred_fallthru
          _
        // Predicated region
        $region53: #{tpu_custom_call.1} parent=43 // pred_check
          %p315 = pneg %p96
        $region54: #{tpu_custom_call.1} parent=43 // pred_check_branch
          %317 = sbr.rel (%p315) target = $region56
        $region55: #{tpu_custom_call.1} parent=43 // pred_region
          %318 = dma.done [#allocation6], 32
        $region56: #{tpu_custom_call.1} parent=43 // pred_fallthru
          _
        // Predicated region
        $region57: #{tpu_custom_call.1} parent=43 // pred_check
          %p319 = pneg %p117
        $region58: #{tpu_custom_call.1} parent=43 // pred_check_branch
          %321 = sbr.rel (%p319) target = $region60
        $region59: #{tpu_custom_call.1} parent=43 // pred_region
          %322 = dma.done [#allocation9], 32
        $region60: #{tpu_custom_call.1} parent=43 // pred_fallthru
          _
        // Predicated region
        $region61: #{tpu_custom_call.1} parent=43 // pred_check
          %p323 = pneg %p138
        $region62: #{tpu_custom_call.1} parent=43 // pred_check_branch
          %325 = sbr.rel (%p323) target = $region64
        $region63: #{tpu_custom_call.1} parent=43 // pred_region
          %326 = dma.done [#allocation9], 32
        $region64: #{tpu_custom_call.1} parent=43 // pred_fallthru
          _
        // Predicated region
        $region65: #{tpu_custom_call.1} parent=43 // pred_check
          %p327 = pneg %p159
        $region66: #{tpu_custom_call.1} parent=43 // pred_check_branch
          %329 = sbr.rel (%p327) target = $region68
        $region67: #{tpu_custom_call.1} parent=43 // pred_region
          %330 = dma.done [#allocation12], 32
        $region68: #{tpu_custom_call.1} parent=43 // pred_fallthru
          _
        %s331 = sand.u32 %s36, 1
        %s332 = scalar_lea.sflag [#allocation3], %s331
        %s333 = sand.u32 %s36, 1
        %s334 = smul.addr %s333, 16
        %s335 = scalar_lea.vmem [#allocation2], %s334
        %p336 = pneg %p49
        %p337 = pneg %p46
        %s338 = sand.u32 %s28, 1
        %s339 = scalar_lea.sflag [#allocation6], %s338
        %s340 = sand.u32 %s62, 1
        %s341 = smul.addr %s340, 16
        %s342 = scalar_lea.vmem [#allocation5], %s341
        %p343 = pneg %p75
        %p344 = pneg %p72
        %p345 = pneg %p96
        %p346 = pneg %p93
        %p347 = pneg %p117
        %p348 = pneg %p114
        %p349 = pneg %p138
        %p350 = pneg %p135
        %p351 = pneg %p159
        %p352 = pneg %p156
        %p353 = pneg %p185
        %p354 = pneg %p182
        %s355 = sand.u32 %s172, 1
        %s356 = scalar_lea.sflag [#allocation4], %s355
        %s357 = sand.u32 %s172, 1
        %s358 = smul.addr %s357, 16
        %s359 = scalar_lea.vmem [#allocation13], %s358
        %v361 = vld [vmem:[%s301] sm:$0xff]
        %v362 = vld [vmem:[%s301 + $0x8] sm:$0xff]
        %v363 = vld [vmem:[%s310] sm:$0xff]
        %v364 = vld [vmem:[%s310 + $0x8] sm:$0xff]
        %v365 = vrot.slane %v361, 7
        %v366 = vrot.slane %v362, 7
        %v367 = vlaneseq
        %v368 = vshrl.u32 %v367, 7
        %vm369 = vcmp.lt.s32.totalorder %v368, 1
        %v370 = vsel %vm369, %v365, %v366
        %v371 = vsel %vm369, %v366, %v365
        %v372 = vrot.slane %v361, 1
        %v373 = vrot.slane %v362, 1
        %vm374 = vcmp.lt.s32.totalorder %v368, 7
        %v375 = vsel %vm374, %v372, %v373
        %v376 = vsel %vm374, %v373, %v372
        %v377 = vpack.c.bf16 %v370, %v371
        %v378 = vld [vmem:[#allocation7] sm:$0x3]
        %v379 = vpack.c.bf16 %v362, %v361
        %v380 = vld [vmem:[#allocation8] sm:$0x3]
        %vm381 = vcmask 31744
        %v383 = vsel %vm381, %v379, 0
        %vm385 = vcmask 1041408
        %v387 = vsel %vm385, %v380, 0
        %389 = vmatprep.subr.bf16.mxu0 0
        %390 = vmatpush1.bf16.msra.mxu0 %v387
        %391 = vmatprep.subr.bf16.mxu0 0
        %392 = vmatpush1.bf16.msra.mxu0 0
        %393 = vmatprep.subr.bf16.mxu0 0
        %394 = vmatpush1.bf16.msra.mxu0 0
        %395 = vmatprep.subr.bf16.mxu0 0
        %396 = vmatpush1.bf16.msra.mxu0 0
        %397 = vmatprep.subr.bf16.mxu0 0
        %398 = vmatpush1.bf16.msra.mxu0 0
        %399 = vmatprep.subr.bf16.mxu0 0
        %400 = vmatpush1.bf16.msra.mxu0 0
        %401 = vmatprep.subr.bf16.mxu0 0
        %402 = vmatpush1.bf16.msra.mxu0 0
        %403 = vmatprep.subr.bf16.mxu0 0
        %404 = vmatpush1.bf16.msra.mxu0 0
        %405 = vmatprep.subr.bf16.mxu0 0
        %406 = vmatpush1.bf16.msra.mxu0 0
        %407 = vmatprep.subr.bf16.mxu0 0
        %408 = vmatpush1.bf16.msra.mxu0 0
        %409 = vmatprep.subr.bf16.mxu0 0
        %410 = vmatpush1.bf16.msra.mxu0 0
        %411 = vmatprep.subr.bf16.mxu0 0
        %412 = vmatpush1.bf16.msra.mxu0 0
        %413 = vmatprep.subr.bf16.mxu0 0
        %414 = vmatpush1.bf16.msra.mxu0 0
        %415 = vmatprep.subr.bf16.mxu0 0
        %416 = vmatpush1.bf16.msra.mxu0 0
        %417 = vmatprep.subr.bf16.mxu0 0
        %418 = vmatpush1.bf16.msra.mxu0 0
        %419 = vmatprep.subr.bf16.mxu0 0
        %420 = vmatpush1.bf16.msra.mxu0 0
        %421 = vmatprep.mubr.bf16.mxu0 0
        %422 = vmatmul.mubr.bf16.gmra.mrb[0].mxu0 %v383
        %v423 = vpop.f32.mrb[0].mxu0
        %v424 = vadd.f32 0.0, %v423
        %v425 = vpop.f32.mrb[0].mxu0
        %v426 = vpop.f32.mrb[0].mxu0
        %v427 = vadd.f32 0.0, %v426
        %v428 = vpop.f32.mrb[0].mxu0
        %429 = vdwg.mxu0
        %v431 = vsel %vm381, %v377, 0
        %v434 = vsel %vm385, %v378, 0
        %436 = vmatprep.subr.bf16.mxu0 0
        %437 = vmatpush1.bf16.msra.mxu0 %v434
        %438 = vmatprep.subr.bf16.mxu0 0
        %439 = vmatpush1.bf16.msra.mxu0 0
        %440 = vmatprep.subr.bf16.mxu0 0
        %441 = vmatpush1.bf16.msra.mxu0 0
        %442 = vmatprep.subr.bf16.mxu0 0
        %443 = vmatpush1.bf16.msra.mxu0 0
        %444 = vmatprep.subr.bf16.mxu0 0
        %445 = vmatpush1.bf16.msra.mxu0 0
        %446 = vmatprep.subr.bf16.mxu0 0
        %447 = vmatpush1.bf16.msra.mxu0 0
        %448 = vmatprep.subr.bf16.mxu0 0
        %449 = vmatpush1.bf16.msra.mxu0 0
        %450 = vmatprep.subr.bf16.mxu0 0
        %451 = vmatpush1.bf16.msra.mxu0 0
        %452 = vmatprep.subr.bf16.mxu0 0
        %453 = vmatpush1.bf16.msra.mxu0 0
        %454 = vmatprep.subr.bf16.mxu0 0
        %455 = vmatpush1.bf16.msra.mxu0 0
        %456 = vmatprep.subr.bf16.mxu0 0
        %457 = vmatpush1.bf16.msra.mxu0 0
        %458 = vmatprep.subr.bf16.mxu0 0
        %459 = vmatpush1.bf16.msra.mxu0 0
        %460 = vmatprep.subr.bf16.mxu0 0
        %461 = vmatpush1.bf16.msra.mxu0 0
        %462 = vmatprep.subr.bf16.mxu0 0
        %463 = vmatpush1.bf16.msra.mxu0 0
        %464 = vmatprep.subr.bf16.mxu0 0
        %465 = vmatpush1.bf16.msra.mxu0 0
        %466 = vmatprep.subr.bf16.mxu0 0
        %467 = vmatpush1.bf16.msra.mxu0 0
        %468 = vmatprep.mubr.bf16.mxu0 0
        %469 = vmatmul.mubr.bf16.gmra.mrb[0].mxu0 %v431
        %v470 = vpop.f32.mrb[0].mxu0
        %v471 = vadd.f32 %v424, %v470
        %v472 = vpop.f32.mrb[0].mxu0
        %v473 = vpop.f32.mrb[0].mxu0
        %v474 = vadd.f32 %v427, %v473
        %v475 = vpop.f32.mrb[0].mxu0
        %476 = vdwg.mxu0
        %v477 = vpack.c.bf16 %v376, %v375
        %v478 = vld [vmem:[#allocation10] sm:$0x3]
        %v480 = vsel %vm381, %v477, 0
        %v483 = vsel %vm385, %v478, 0
        %485 = vmatprep.subr.bf16.mxu0 0
        %486 = vmatpush1.bf16.msra.mxu0 %v483
        %487 = vmatprep.subr.bf16.mxu0 0
        %488 = vmatpush1.bf16.msra.mxu0 0
        %489 = vmatprep.subr.bf16.mxu0 0
        %490 = vmatpush1.bf16.msra.mxu0 0
        %491 = vmatprep.subr.bf16.mxu0 0
        %492 = vmatpush1.bf16.msra.mxu0 0
        %493 = vmatprep.subr.bf16.mxu0 0
        %494 = vmatpush1.bf16.msra.mxu0 0
        %495 = vmatprep.subr.bf16.mxu0 0
        %496 = vmatpush1.bf16.msra.mxu0 0
        %497 = vmatprep.subr.bf16.mxu0 0
        %498 = vmatpush1.bf16.msra.mxu0 0
        %499 = vmatprep.subr.bf16.mxu0 0
        %500 = vmatpush1.bf16.msra.mxu0 0
        %501 = vmatprep.subr.bf16.mxu0 0
        %502 = vmatpush1.bf16.msra.mxu0 0
        %503 = vmatprep.subr.bf16.mxu0 0
        %504 = vmatpush1.bf16.msra.mxu0 0
        %505 = vmatprep.subr.bf16.mxu0 0
        %506 = vmatpush1.bf16.msra.mxu0 0
        %507 = vmatprep.subr.bf16.mxu0 0
        %508 = vmatpush1.bf16.msra.mxu0 0
        %509 = vmatprep.subr.bf16.mxu0 0
        %510 = vmatpush1.bf16.msra.mxu0 0
        %511 = vmatprep.subr.bf16.mxu0 0
        %512 = vmatpush1.bf16.msra.mxu0 0
        %513 = vmatprep.subr.bf16.mxu0 0
        %514 = vmatpush1.bf16.msra.mxu0 0
        %515 = vmatprep.subr.bf16.mxu0 0
        %516 = vmatpush1.bf16.msra.mxu0 0
        %517 = vmatprep.mubr.bf16.mxu0 0
        %518 = vmatmul.mubr.bf16.gmra.mrb[0].mxu0 %v480
        %v519 = vpop.f32.mrb[0].mxu0
        %v520 = vadd.f32 0.0, %v519
        %v521 = vpop.f32.mrb[0].mxu0
        %v522 = vpop.f32.mrb[0].mxu0
        %v523 = vadd.f32 0.0, %v522
        %v524 = vpop.f32.mrb[0].mxu0
        %525 = vdwg.mxu0
        %v526 = vadd.f32 %v471, %v520
        %v527 = vadd.f32 %v474, %v523
        %v528 = vpack.c.bf16 %v364, %v363
        %v529 = vld [vmem:[#allocation11] sm:$0x3]
        %v531 = vsel %vm381, %v528, 0
        %v534 = vsel %vm385, %v529, 0
        %536 = vmatprep.subr.bf16.mxu0 0
        %537 = vmatpush1.bf16.msra.mxu0 %v534
        %538 = vmatprep.subr.bf16.mxu0 0
        %539 = vmatpush1.bf16.msra.mxu0 0
        %540 = vmatprep.subr.bf16.mxu0 0
        %541 = vmatpush1.bf16.msra.mxu0 0
        %542 = vmatprep.subr.bf16.mxu0 0
        %543 = vmatpush1.bf16.msra.mxu0 0
        %544 = vmatprep.subr.bf16.mxu0 0
        %545 = vmatpush1.bf16.msra.mxu0 0
        %546 = vmatprep.subr.bf16.mxu0 0
        %547 = vmatpush1.bf16.msra.mxu0 0
        %548 = vmatprep.subr.bf16.mxu0 0
        %549 = vmatpush1.bf16.msra.mxu0 0
        %550 = vmatprep.subr.bf16.mxu0 0
        %551 = vmatpush1.bf16.msra.mxu0 0
        %552 = vmatprep.subr.bf16.mxu0 0
        %553 = vmatpush1.bf16.msra.mxu0 0
        %554 = vmatprep.subr.bf16.mxu0 0
        %555 = vmatpush1.bf16.msra.mxu0 0
        %556 = vmatprep.subr.bf16.mxu0 0
        %557 = vmatpush1.bf16.msra.mxu0 0
        %558 = vmatprep.subr.bf16.mxu0 0
        %559 = vmatpush1.bf16.msra.mxu0 0
        %560 = vmatprep.subr.bf16.mxu0 0
        %561 = vmatpush1.bf16.msra.mxu0 0
        %562 = vmatprep.subr.bf16.mxu0 0
        %563 = vmatpush1.bf16.msra.mxu0 0
        %564 = vmatprep.subr.bf16.mxu0 0
        %565 = vmatpush1.bf16.msra.mxu0 0
        %566 = vmatprep.subr.bf16.mxu0 0
        %567 = vmatpush1.bf16.msra.mxu0 0
        %568 = vmatprep.mubr.bf16.mxu0 0
        %569 = vmatmul.mubr.bf16.gmra.mrb[0].mxu0 %v531
        %v570 = vpop.f32.mrb[0].mxu0
        %v571 = vadd.f32 0.0, %v570
        %v572 = vpop.f32.mrb[0].mxu0
        %v573 = vpop.f32.mrb[0].mxu0
        %v574 = vadd.f32 0.0, %v573
        %v575 = vpop.f32.mrb[0].mxu0
        %576 = vdwg.mxu0
        %v577 = vadd.f32 %v526, %v571
        %v578 = vadd.f32 %v527, %v574
        %579 = vst [vmem:[%s359] sm:$0xff] %v577
        %580 = vst [vmem:[%s359 + $0x8] sm:$0xff] %v578
        %s581 = sand.u32 %s172, 1
        %s582 = scalar_lea.sflag [#allocation4], %s581
        %s583 = sand.u32 %s172, 1
        %s584 = smul.addr %s583, 16
        %s585 = scalar_lea.vmem [#allocation13], %s584
        // Predicated region
        $region69: #{tpu_custom_call.1} parent=43 // pred_check
          %p586 = pneg %p182
        $region70: #{tpu_custom_call.1} parent=43 // pred_check_branch
          %588 = sbr.rel (%p586) target = $region72
        $region71: #{tpu_custom_call.1} parent=43 // pred_region
          %s590 = ssub.s32 256, 256
          %591 = vsyncadd %s582, %s590
          %s592 = smul.addr %s28, 2
          %s593 = smul.addr %s592, 128
          %s594 = scalar_lea.hbm %s6, %s593
          %s595 = sshll.u32 %s585, 4
          %s596 = int_to_ptr.vmem [resolvable:$true] %s595
          %601 = dma.vmem_to_hbm [thread:$0]  %s596, 256, %s594, %s582, 128, 128, 8
        $region72: #{tpu_custom_call.1} parent=43 // pred_fallthru
          _
      $region44: #{tpu_custom_call.1} parent=5 // pred_fallthru
        _
      %p602 = scmp.le.s32.totalorder 2, %s23
      // Predicated region
      $region73: #{tpu_custom_call.1} parent=5 // pred_check
        %p603 = pneg %p602
      $region74: #{tpu_custom_call.1} parent=5 // pred_check_branch
        %605 = sbr.rel (%p603) target = $region76
      $region75: #{tpu_custom_call.1} parent=5 // pred_region
        %s606 = ssub.s32 %s23, 2
        // Predicated region
        $region77: #{tpu_custom_call.1} parent=75 // pred_check
          %p607 = pneg %p188
        $region78: #{tpu_custom_call.1} parent=75 // pred_check_branch
          %609 = sbr.rel (%p607) target = $region80
        $region79: #{tpu_custom_call.1} parent=75 // pred_region
          %s610 = sand.u32 %s173, 1
          %s611 = scalar_lea.sflag [#allocation4], %s610
          %s612 = sand.u32 %s173, 1
          %s613 = smul.addr %s612, 16
          %s614 = scalar_lea.vmem [#allocation13], %s613
          %615 = dma.done %s611, 256
        $region80: #{tpu_custom_call.1} parent=75 // pred_fallthru
          _
      $region76: #{tpu_custom_call.1} parent=5 // pred_fallthru
        _
    $region6: #{tpu_custom_call.1} parent=1 // loop_footer
      %s27 = sadd.s32 1, %s23
    $region7: #{tpu_custom_call.1} parent=1 // loop_footer_branch
      %22 = sbr.rel target = $region3
    $region8: #{tpu_custom_call.1} parent=1 // loop_exit
      _
    %616 = vsyncpa [#allocation3], 1
    %s617 = scalar_lea.sflag [#allocation3], 1
    %618 = vsyncpa %s617, 1
    %619 = vsyncpa [#allocation6], 1
    %s620 = scalar_lea.sflag [#allocation6], 1
    %621 = vsyncpa %s620, 1
    %622 = vsyncpa [#allocation9], 1
    %623 = vsyncpa [#allocation12], 1
    %624 = vsyncpa [#allocation4], 1
    %s625 = scalar_lea.sflag [#allocation4], 1
    %626 = vsyncpa %s625, 1

</llo_original>
